<compile_context>
chip_gen: v6e
topology: v6e:2x2x1
jax: 0.10.0
libtpu: 0.0.40
codegen_flags: <defaults>
</compile_context>

<pallas_src>
import functools
import math

import jax
import jax.numpy as jnp
from jax.experimental import pallas as pl
from jax.experimental.pallas import tpu as pltpu


def _round_up(x, m):
    return ((x + m - 1) // m) * m


def _attentive_kernel(q_ref, k_ref, v_ref, w1_ref, b1_ref, w2_ref, b2_ref,
                      lnw_ref, lnb_ref, o_ref, *, d_true, padded,
                      is_layer_norm, eps, use_bf16_matmul, approx_recip):
    f32 = jnp.float32

    q = q_ref[...]                       # (tl, Dp) in input dtype
    k = k_ref[...]                       # (L,  Dp)
    v = v_ref[...]                       # (L,  Dp)

    def mm(a, b, dims):
        # dims = ((lhs_contract,), (rhs_contract,)); no in-kernel transposes,
        # the MXU consumes both operands directly. f32 accumulation always.
        if use_bf16_matmul:
            a = a.astype(jnp.bfloat16)
            b = b.astype(jnp.bfloat16)
        elif a.dtype != b.dtype:
            a = a.astype(b.dtype)
        return jax.lax.dot_general(a, b, (dims, ((), ())),
                                   preferred_element_type=f32)

    # Fold 1/(sqrt(dk)+eps) into Q: O(tl*Dp) work instead of O(tl*L) on scores.
    scale = 1.0 / (math.sqrt(max(1.0, float(d_true))) + eps)
    qs = (q.astype(f32) * scale).astype(q.dtype)

    # scores = (Q*scale) @ K^T : contract the feature dims of both operands.
    s = mm(qs, k, ((1,), (1,)))          # (tl, L), f32

    # Numerically stable softmax; statistics stay in f32.
    s = s - jnp.max(s, axis=-1, keepdims=True)
    e = jnp.exp(s)
    denom = jnp.sum(e, axis=-1, keepdims=True)
    if approx_recip:
        # EUP slot (~free) but ~1e-3 relative error; opt-in only.
        p = e * pl.reciprocal(denom, approx=True)
    else:
        p = e / denom

    v_att = mm(p, v, ((1,), (0,)))       # (tl, Dp), f32
    x = q.astype(f32) + v_att

    if is_layer_norm:
        gamma = lnw_ref[...].astype(f32)     # (1, Dp); padded entries are 0
        beta = lnb_ref[...].astype(f32)
        inv_d = 1.0 / float(d_true)
        if padded:
            dp_ = q_ref.shape[-1]
            dmask = (jax.lax.broadcasted_iota(jnp.int32, (1, dp_), 1)
                     < d_true).astype(f32)

        def layer_norm(z):
            # Padded feature columns of z are exactly zero by construction, so
            # the mean over the true width d_true needs no mask; only `diff`
            # (z - mu) needs masking for the variance / normalized output.
            mu = jnp.sum(z, axis=-1, keepdims=True) * inv_d
            diff = z - mu
            if padded:
                diff = diff * dmask
            var = jnp.sum(diff * diff, axis=-1, keepdims=True) * inv_d
            zn = diff * jax.lax.rsqrt(var + 1e-5)   # PyTorch LayerNorm eps
            return zn * gamma + beta                # padded cols stay 0

        x = layer_norm(x)

    # FFN(x) = linear2(relu(linear1(x))) with PyTorch (out, in) weights:
    # x @ W.T == contract dim 1 of x with dim 1 of W (no transpose).
    h = mm(x, w1_ref[...], ((1,), (1,))) + b1_ref[...].astype(f32)
    h = jnp.maximum(h, 0.0)
    ffn = mm(h, w2_ref[...], ((1,), (1,))) + b2_ref[...].astype(f32)

    out = ffn + x
    if is_layer_norm:
        out = layer_norm(out)

    o_ref[...] = out.astype(o_ref.dtype)


def attentive_module2(Q, K, V, w1, b1, w2, b2, ln_w=None, ln_b=None, *,
                      is_layer_norm=False, eps=1e-8, q_tile=256,
                      use_bf16_matmul=False, approx_softmax_recip=False):
    """Pallas implementation of AttentiveModule2.forward.

    Q, K, V: (B, L, D).  w1, w2: (D, D) in PyTorch (out, in) layout.
    b1, b2: (D,).  Returns (B, L, D) in Q.dtype.
    """
    B, L, D = Q.shape
    if ln_w is None:
        ln_w = jnp.ones((D,), Q.dtype)
    if ln_b is None:
        ln_b = jnp.zeros((D,), Q.dtype)

    itemsize = jnp.dtype(Q.dtype).itemsize

    # ---- lane-dense feature padding (exact: padded weights/biases are 0) ----
    Dp = _round_up(D, 128)
    pad_d = Dp - D

    def pad_feat(a):
        if pad_d == 0:
            return a
        return jnp.pad(a, [(0, 0)] * (a.ndim - 1) + [(0, pad_d)])

    Kp, Vp = pad_feat(K), pad_feat(V)
    w1p = w1 if pad_d == 0 else jnp.pad(w1, ((0, pad_d), (0, pad_d)))
    w2p = w2 if pad_d == 0 else jnp.pad(w2, ((0, pad_d), (0, pad_d)))
    b1p = pad_feat(b1).reshape(1, Dp)
    b2p = pad_feat(b2).reshape(1, Dp)
    lnwp = pad_feat(ln_w).reshape(1, Dp)
    lnbp = pad_feat(ln_b).reshape(1, Dp)

    # ---- query-row tiling: fixed tile + cdiv grid + zero-padded tail rows ---
    # Sublane alignment by dtype width: f32 -> 8, bf16 -> 16, int8/fp8 -> 32.
    row_align = {4: 8, 2: 16, 1: 32}.get(itemsize, 8)
    tl = min(_round_up(q_tile, row_align), _round_up(L, row_align))
    n_q = -(-L // tl)
    Lq = n_q * tl
    pad_l = Lq - L

    # Padded query rows are zeros; their finite outputs are sliced off below
    # and never contaminate real rows (each query row is independent).
    if pad_d == 0 and pad_l == 0:
        Qp = Q
    else:
        Qp = jnp.pad(Q, ((0, 0), (0, pad_l), (0, pad_d)))

    kernel = functools.partial(
        _attentive_kernel, d_true=D, padded=pad_d > 0,
        is_layer_norm=is_layer_norm, eps=eps,
        use_bf16_matmul=use_bf16_matmul, approx_recip=approx_softmax_recip)

    q_spec = pl.BlockSpec((None, tl, Dp), lambda b, i: (b, i, 0))
    kv_spec = pl.BlockSpec((None, L, Dp), lambda b, i: (b, 0, 0))
    out_spec = pl.BlockSpec((None, tl, Dp), lambda b, i: (b, i, 0))

    # Weights / biases / LN params: constant index_map -> DMA'd once; a single
    # buffer halves their VMEM footprint (matters most on v7x's 64 MiB VMEM).
    def const_spec(shape):
        idx = lambda b, i: (0, 0)
        try:
            return pl.BlockSpec(shape, idx, pipeline_mode=pl.Buffered(1))
        except Exception:   # older jax without pipeline_mode / Buffered(1)
            return pl.BlockSpec(shape, idx)

    mat_spec = const_spec((Dp, Dp))
    vec_spec = const_spec((1, Dp))

    # ---- VMEM budget: clamp to ~75% of the chip's physical VMEM -------------
    try:
        vmem_cap = int(pltpu.get_tpu_info().vmem_capacity_bytes)
    except Exception:       # no TPU / interpret mode: assume smallest (v7x)
        vmem_cap = 64 * 2 ** 20
    cap = (vmem_cap * 3) // 4
    blk_bytes = (2 * tl * Dp * itemsize            # Q block (double-buffered)
                 + 2 * 2 * L * Dp * itemsize       # K, V blocks (double-buffered)
                 + 2 * tl * Dp * itemsize          # out block (double-buffered)
                 + (2 * Dp * Dp + 4 * Dp) * itemsize   # weights/biases (single)
                 + (3 * tl * L + 6 * tl * Dp) * 4)     # f32 intermediates
    vmem_limit = int(min(cap, max(min(32 * 2 ** 20, cap), (blk_bytes * 3) // 2)))

    cost = pl.CostEstimate(
        flops=B * (4 * Lq * L * Dp + 4 * Lq * Dp * Dp),
        transcendentals=B * Lq * L,
        bytes_accessed=itemsize * (B * (2 * Lq + 2 * L) * Dp
                                   + 2 * Dp * Dp + 4 * Dp),
    )

    out_p = pl.pallas_call(
        kernel,
        out_shape=jax.ShapeDtypeStruct((B, Lq, Dp), Q.dtype),
        grid_spec=pltpu.PrefetchScalarGridSpec(
            num_scalar_prefetch=0,
            # B is the leading parallel axis so a megacore split (v7x) prefers
            # it, keeping each core's K/V resident across its n_q steps.
            grid=(B, n_q),
            in_specs=[q_spec, kv_spec, kv_spec,
                      mat_spec, vec_spec, mat_spec, vec_spec,
                      vec_spec, vec_spec],
            out_specs=out_spec,
        ),
        compiler_params=pltpu.CompilerParams(
            dimension_semantics=("parallel", "parallel"),
            vmem_limit_bytes=vmem_limit),
        cost_estimate=cost,
    )(Qp, Kp, Vp, w1p, b1p, w2p, b2p, lnwp, lnbp)

    if pad_d or pad_l:
        out_p = out_p[:, :L, :D]
    return out_p


def _reference(Q, K, V, w1, b1, w2, b2, ln_w=None, ln_b=None, *,
               is_layer_norm=False, eps=1e-8):
    """Pure-JAX mirror of the PyTorch forward.  Evaluated at HIGHEST matmul
    precision so the comparison is not dominated by XLA's default bf16 passes
    for f32 dots on TPU."""
    hp = jax.lax.Precision.HIGHEST
    D = Q.shape[-1]
    dk = max(1.0, float(D))
    s = jnp.einsum('bld,bmd->blm', Q, K, precision=hp) / (math.sqrt(dk) + eps)
    p = jax.nn.softmax(s, axis=-1)
    v_att = jnp.einsum('blm,bmd->bld', p, V, precision=hp)

    def layer_norm(z):
        mu = jnp.mean(z, axis=-1, keepdims=True)
        var = jnp.mean((z - mu) ** 2, axis=-1, keepdims=True)
        return (z - mu) * jax.lax.rsqrt(var + 1e-5) * ln_w + ln_b

    x = Q + v_att
    if is_layer_norm:
        x = layer_norm(x)
    h = jnp.maximum(jnp.einsum('bld,ed->ble', x, w1, precision=hp) + b1, 0.0)
    ffn = jnp.einsum('bld,ed->ble', h, w2, precision=hp) + b2
    out = ffn + x
    if is_layer_norm:
        out = layer_norm(out)
    return out


if __name__ == "__main__":
    key = jax.random.PRNGKey(0)
    B, L, D = 2, 8, 32

    kq, kk, kv, kw1, kb1, kw2, kb2, kg, kbeta = jax.random.split(key, 9)
    Q = jax.random.normal(kq, (B, L, D), jnp.float32)
    K = jax.random.normal(kk, (B, L, D), jnp.float32)
    V = jax.random.normal(kv, (B, L, D), jnp.float32)

    # xavier_normal_ for (D, D): std = sqrt(2 / (fan_in + fan_out)) = 1/sqrt(D)
    xav = (2.0 / (D + D)) ** 0.5
    w1 = xav * jax.random.normal(kw1, (D, D), jnp.float32)
    w2 = xav * jax.random.normal(kw2, (D, D), jnp.float32)
    # nn.Linear default bias init: U(-1/sqrt(fan_in), 1/sqrt(fan_in))
    bound = 1.0 / (D ** 0.5)
    b1 = jax.random.uniform(kb1, (D,), jnp.float32, -bound, bound)
    b2 = jax.random.uniform(kb2, (D,), jnp.float32, -bound, bound)
    ln_w = 1.0 + 0.1 * jax.random.normal(kg, (D,), jnp.float32)
    ln_b = 0.1 * jax.random.normal(kbeta, (D,), jnp.float32)

    # Under interpret mode or full-precision MXU paths the error is ~1e-5; the
    # looser bound also covers backends where one side runs its f32 matmuls as
    # bf16 MXU passes (XLA DEFAULT precision).  Structural bugs give O(1) error.
    tol = dict(atol=2e-2, rtol=2e-2)

    # 1) is_layer_norm=False (the default PyTorch path)
    out = attentive_module2(Q, K, V, w1, b1, w2, b2, is_layer_norm=False)
    out = jax.block_until_ready(out)
    ref = _reference(Q, K, V, w1, b1, w2, b2, is_layer_norm=False)
    assert out.shape == (B, L, D)
    assert bool(jnp.allclose(out, ref, **tol)), "mismatch (no layer norm)"

    # 2) is_layer_norm=True (one shared LayerNorm applied twice, as in PyTorch)
    out_ln = attentive_module2(Q, K, V, w1, b1, w2, b2, ln_w, ln_b,
                               is_layer_norm=True)
    out_ln = jax.block_until_ready(out_ln)
    ref_ln = _reference(Q, K, V, w1, b1, w2, b2, ln_w, ln_b,
                        is_layer_norm=True)
    assert bool(jnp.allclose(out_ln, ref_ln, **tol)), "mismatch (layer norm)"

    # 3) ragged L (exercises cdiv query tiling + zero-padded tail rows)
    L2 = 20
    Q2 = jax.random.normal(kq, (B, L2, D), jnp.float32)
    K2 = jax.random.normal(kk, (B, L2, D), jnp.float32)
    V2 = jax.random.normal(kv, (B, L2, D), jnp.float32)
    out2 = jax.block_until_ready(
        attentive_module2(Q2, K2, V2, w1, b1, w2, b2, is_layer_norm=False))
    ref2 = _reference(Q2, K2, V2, w1, b1, w2, b2, is_layer_norm=False)
    assert out2.shape == (B, L2, D)
    assert bool(jnp.allclose(out2, ref2, **tol)), "mismatch (ragged L)"

    print("KERNEL_OK")
</pallas_src>

<mosaic_0001>
module attributes {stable_mosaic.version = 11 : i64} {
  func.func @_attentive_kernel(%arg0: i32, %arg1: i32, %arg2: memref<1x8x128xf32, #tpu.memory_space<vmem>>, %arg3: memref<1x8x128xf32, #tpu.memory_space<vmem>>, %arg4: memref<1x8x128xf32, #tpu.memory_space<vmem>>, %arg5: memref<128x128xf32, #tpu.memory_space<vmem>>, %arg6: memref<1x128xf32, #tpu.memory_space<vmem>>, %arg7: memref<128x128xf32, #tpu.memory_space<vmem>>, %arg8: memref<1x128xf32, #tpu.memory_space<vmem>>, %arg9: memref<1x128xf32, #tpu.memory_space<vmem>>, %arg10: memref<1x128xf32, #tpu.memory_space<vmem>>, %arg11: memref<1x8x128xf32, #tpu.memory_space<vmem>>) attributes {dimension_semantics = [#tpu.dimension_semantics<parallel>, #tpu.dimension_semantics<parallel>], iteration_bounds = array<i64: 2, 1>, scalar_prefetch = 0 : i64, scratch_operands = 0 : i64, tpu.core_type = #tpu.core_type<tc>, window_params = [{transform_indices = @transform_0, window_bounds = array<i64: 1, 8, 128>}, {transform_indices = @transform_1, window_bounds = array<i64: 1, 8, 128>}, {transform_indices = @transform_2, window_bounds = array<i64: 1, 8, 128>}, {pipeline_mode = #tpu.pipeline_mode<synchronous>, transform_indices = @transform_3, window_bounds = array<i64: 128, 128>}, {pipeline_mode = #tpu.pipeline_mode<synchronous>, transform_indices = @transform_4, window_bounds = array<i64: 1, 128>}, {pipeline_mode = #tpu.pipeline_mode<synchronous>, transform_indices = @transform_5, window_bounds = array<i64: 128, 128>}, {pipeline_mode = #tpu.pipeline_mode<synchronous>, transform_indices = @transform_6, window_bounds = array<i64: 1, 128>}, {pipeline_mode = #tpu.pipeline_mode<synchronous>, transform_indices = @transform_7, window_bounds = array<i64: 1, 128>}, {pipeline_mode = #tpu.pipeline_mode<synchronous>, transform_indices = @transform_8, window_bounds = array<i64: 1, 128>}, {transform_indices = @transform_9, window_bounds = array<i64: 1, 8, 128>}]} {
    %c0 = arith.constant 0 : index
    %c0_0 = arith.constant 0 : index
    %c0_1 = arith.constant 0 : index
    %0 = vector.load %arg2[%c0, %c0_0, %c0_1] : memref<1x8x128xf32, #tpu.memory_space<vmem>>, vector<1x8x128xf32>
    %1 = vector.shape_cast %0 : vector<1x8x128xf32> to vector<8x128xf32>
    %c0_2 = arith.constant 0 : index
    %c0_3 = arith.constant 0 : index
    %c0_4 = arith.constant 0 : index
    %2 = vector.load %arg3[%c0_2, %c0_3, %c0_4] : memref<1x8x128xf32, #tpu.memory_space<vmem>>, vector<1x8x128xf32>
    %3 = vector.shape_cast %2 : vector<1x8x128xf32> to vector<8x128xf32>
    %c0_5 = arith.constant 0 : index
    %c0_6 = arith.constant 0 : index
    %c0_7 = arith.constant 0 : index
    %4 = vector.load %arg4[%c0_5, %c0_6, %c0_7] : memref<1x8x128xf32, #tpu.memory_space<vmem>>, vector<1x8x128xf32>
    %5 = vector.shape_cast %4 : vector<1x8x128xf32> to vector<8x128xf32>
    %cst = arith.constant 0.176776692 : f32
    %6 = vector.broadcast %cst : f32 to vector<8x128xf32>
    %7 = arith.mulf %1, %6 : vector<8x128xf32>
    %cst_8 = arith.constant dense<0.000000e+00> : vector<8x8xf32>
    %8 = tpu.matmul %7, %3, %cst_8 {dimension_numbers = #tpu.dot_dimension_numbers<[1], [1], [0], [0], [0, 0, 1, 0], [], []>} : vector<8x128xf32>, vector<8x128xf32>, vector<8x8xf32> -> vector<8x8xf32>
    %cst_9 = arith.constant dense<0xFF800000> : vector<8xf32>
    %9 = vector.multi_reduction <maximumf>, %8, %cst_9 [1] : vector<8x8xf32> to vector<8xf32>
    %10 = vector.shape_cast %9 : vector<8xf32> to vector<8x1xf32>
    %11 = vector.broadcast %10 : vector<8x1xf32> to vector<8x8xf32>
    %12 = arith.subf %8, %11 : vector<8x8xf32>
    %13 = math.exp %12 : vector<8x8xf32>
    %cst_10 = arith.constant dense<0.000000e+00> : vector<8xf32>
    %14 = vector.multi_reduction <add>, %13, %cst_10 [1] : vector<8x8xf32> to vector<8xf32>
    %15 = vector.shape_cast %14 : vector<8xf32> to vector<8x1xf32>
    %16 = vector.broadcast %15 : vector<8x1xf32> to vector<8x8xf32>
    %17 = arith.divf %13, %16 : vector<8x8xf32>
    %cst_11 = arith.constant dense<0.000000e+00> : vector<8x128xf32>
    %18 = tpu.matmul %17, %5, %cst_11 {dimension_numbers = #tpu.dot_dimension_numbers<[1], [0], [0], [1], [0, 0, 1, 1], [], []>} : vector<8x8xf32>, vector<8x128xf32>, vector<8x128xf32> -> vector<8x128xf32>
    %19 = arith.addf %1, %18 : vector<8x128xf32>
    %c0_12 = arith.constant 0 : index
    %c0_13 = arith.constant 0 : index
    %20 = vector.load %arg5[%c0_12, %c0_13] : memref<128x128xf32, #tpu.memory_space<vmem>>, vector<128x128xf32>
    %cst_14 = arith.constant dense<0.000000e+00> : vector<8x128xf32>
    %21 = tpu.matmul %19, %20, %cst_14 {dimension_numbers = #tpu.dot_dimension_numbers<[1], [1], [0], [0], [0, 0, 1, 0], [], []>} : vector<8x128xf32>, vector<128x128xf32>, vector<8x128xf32> -> vector<8x128xf32>
    %c0_15 = arith.constant 0 : index
    %c0_16 = arith.constant 0 : index
    %22 = vector.load %arg6[%c0_15, %c0_16] : memref<1x128xf32, #tpu.memory_space<vmem>>, vector<1x128xf32>
    %23 = vector.broadcast %22 : vector<1x128xf32> to vector<8x128xf32>
    %24 = arith.addf %21, %23 : vector<8x128xf32>
    %cst_17 = arith.constant 0.000000e+00 : f32
    %25 = vector.broadcast %cst_17 : f32 to vector<8x128xf32>
    %26 = arith.maximumf %24, %25 : vector<8x128xf32>
    %c0_18 = arith.constant 0 : index
    %c0_19 = arith.constant 0 : index
    %27 = vector.load %arg7[%c0_18, %c0_19] : memref<128x128xf32, #tpu.memory_space<vmem>>, vector<128x128xf32>
    %cst_20 = arith.constant dense<0.000000e+00> : vector<8x128xf32>
    %28 = tpu.matmul %26, %27, %cst_20 {dimension_numbers = #tpu.dot_dimension_numbers<[1], [1], [0], [0], [0, 0, 1, 0], [], []>} : vector<8x128xf32>, vector<128x128xf32>, vector<8x128xf32> -> vector<8x128xf32>
    %c0_21 = arith.constant 0 : index
    %c0_22 = arith.constant 0 : index
    %29 = vector.load %arg8[%c0_21, %c0_22] : memref<1x128xf32, #tpu.memory_space<vmem>>, vector<1x128xf32>
    %30 = vector.broadcast %29 : vector<1x128xf32> to vector<8x128xf32>
    %31 = arith.addf %28, %30 : vector<8x128xf32>
    %32 = arith.addf %31, %19 : vector<8x128xf32>
    %c0_23 = arith.constant 0 : index
    %c0_24 = arith.constant 0 : index
    %c0_25 = arith.constant 0 : index
    %33 = vector.load %arg11[%c0_23, %c0_24, %c0_25] : memref<1x8x128xf32, #tpu.memory_space<vmem>>, vector<1x8x128xf32>
    %34 = vector.shape_cast %33 : vector<1x8x128xf32> to vector<8x128xf32>
    %35 = vector.shape_cast %32 : vector<8x128xf32> to vector<1x8x128xf32>
    tpu.vector_store %arg11[%c0_23, %c0_24, %c0_25], %35 {strides = array<i32>} : memref<1x8x128xf32, #tpu.memory_space<vmem>>, vector<1x8x128xf32>,
    return
  }
  func.func @transform_0(%arg0: i32, %arg1: i32) -> (i32, i32, i32) {
    %c0_i32 = arith.constant 0 : i32
    %c0_i32_0 = arith.constant 0 : i32
    return %arg0, %arg1, %c0_i32 : i32, i32, i32
  }
  func.func @transform_1(%arg0: i32, %arg1: i32) -> (i32, i32, i32) {
    %c0_i32 = arith.constant 0 : i32
    %c0_i32_0 = arith.constant 0 : i32
    %c0_i32_1 = arith.constant 0 : i32
    return %arg0, %c0_i32, %c0_i32_0 : i32, i32, i32
  }
  func.func @transform_2(%arg0: i32, %arg1: i32) -> (i32, i32, i32) {
    %c0_i32 = arith.constant 0 : i32
    %c0_i32_0 = arith.constant 0 : i32
    %c0_i32_1 = arith.constant 0 : i32
    return %arg0, %c0_i32, %c0_i32_0 : i32, i32, i32
  }
  func.func @transform_3(%arg0: i32, %arg1: i32) -> (i32, i32) {
    %c0_i32 = arith.constant 0 : i32
    %c0_i32_0 = arith.constant 0 : i32
    %c0_i32_1 = arith.constant 0 : i32
    return %c0_i32, %c0_i32_0 : i32, i32
  }
  func.func @transform_4(%arg0: i32, %arg1: i32) -> (i32, i32) {
    %c0_i32 = arith.constant 0 : i32
    %c0_i32_0 = arith.constant 0 : i32
    %c0_i32_1 = arith.constant 0 : i32
    return %c0_i32, %c0_i32_0 : i32, i32
  }
  func.func @transform_5(%arg0: i32, %arg1: i32) -> (i32, i32) {
    %c0_i32 = arith.constant 0 : i32
    %c0_i32_0 = arith.constant 0 : i32
    %c0_i32_1 = arith.constant 0 : i32
    return %c0_i32, %c0_i32_0 : i32, i32
  }
  func.func @transform_6(%arg0: i32, %arg1: i32) -> (i32, i32) {
    %c0_i32 = arith.constant 0 : i32
    %c0_i32_0 = arith.constant 0 : i32
    %c0_i32_1 = arith.constant 0 : i32
    return %c0_i32, %c0_i32_0 : i32, i32
  }
  func.func @transform_7(%arg0: i32, %arg1: i32) -> (i32, i32) {
    %c0_i32 = arith.constant 0 : i32
    %c0_i32_0 = arith.constant 0 : i32
    %c0_i32_1 = arith.constant 0 : i32
    return %c0_i32, %c0_i32_0 : i32, i32
  }
  func.func @transform_8(%arg0: i32, %arg1: i32) -> (i32, i32) {
    %c0_i32 = arith.constant 0 : i32
    %c0_i32_0 = arith.constant 0 : i32
    %c0_i32_1 = arith.constant 0 : i32
    return %c0_i32, %c0_i32_0 : i32, i32
  }
  func.func @transform_9(%arg0: i32, %arg1: i32) -> (i32, i32, i32) {
    %c0_i32 = arith.constant 0 : i32
    %c0_i32_0 = arith.constant 0 : i32
    return %arg0, %arg1, %c0_i32 : i32, i32, i32
  }
}

</mosaic_0001>

<llo_original>
// kernel: tpu_custom_call.1
$region0: #{tpu_custom_call.1}
  #allocation0 [shape = 'u32[]', space=smem, size = 0x4, offset = 0x4, fixed_abs, tag = 'smem constant byte address 0x4 - core index']
  #allocation1 [shape = 'u32[144,128]{1,0:T(1,128)}', space=vmem, size = 0x12000, scoped, tag = 'internal scratch']
  %s0 = inlined_call_operand.hbm [shape: f32[2,8,128], index: 0, kind: input, shape index: {}]
  %s1 = inlined_call_operand.hbm [shape: f32[2,8,128], index: 1, kind: input, shape index: {}]
  %s2 = inlined_call_operand.hbm [shape: f32[2,8,128], index: 2, kind: input, shape index: {}]
  %s3 = inlined_call_operand.hbm [shape: f32[128,128], index: 3, kind: input, shape index: {}]
  %s4 = inlined_call_operand.vmem [shape: f32[1,128], index: 4, kind: input, shape index: {}]
  %s5 = inlined_call_operand.hbm [shape: f32[128,128], index: 5, kind: input, shape index: {}]
  %s6 = inlined_call_operand.vmem [shape: f32[1,128], index: 6, kind: input, shape index: {}]
  %s7 = inlined_call_operand.vmem [shape: f32[1,128], index: 7, kind: input, shape index: {}]
  %s8 = inlined_call_operand.vmem [shape: f32[1,128], index: 8, kind: input, shape index: {}]
  %s9 = inlined_call_operand.hbm [shape: f32[2,8,128], index: 9, kind: output, shape index: {}]
  %s10 = sld [smem:[#allocation0]]
  $region89: #{tpu_custom_call.1} parent=0
    _
  %s12 = ssub.s32 1, %s10
  %s13 = scalar_select 0, %s12, %s10
  $region1: #{tpu_custom_call.1} parent=0
    #allocation2 [shape = 'u8[8192]{0}', space=vmem, size = 0x2000, scoped, tag = 'input window, operand 0']
    #allocation3 [shape = 's32[2]{0}', space=sflag, size = 0x8, scoped, tag = 'scoped memory for tpu_custom_call.1']
    #allocation4 [shape = 's32[2]{0}', space=sflag, size = 0x8, scoped, tag = 'scoped memory for tpu_custom_call.1']
    #allocation5 [shape = 'u8[8192]{0}', space=vmem, size = 0x2000, scoped, tag = 'input window, operand 1']
    #allocation6 [shape = 's32[2]{0}', space=sflag, size = 0x8, scoped, tag = 'scoped memory for tpu_custom_call.1']
    #allocation7 [shape = 'u8[8192]{0}', space=vmem, size = 0x2000, scoped, tag = 'input window, operand 2']
    #allocation8 [shape = 'u8[65536]{0}', space=vmem, size = 0x10000, scoped, tag = 'input window, operand 3, single buffered']
    #allocation9 [shape = 's32[1]{0}', space=sflag, size = 0x4, scoped, tag = 'scoped memory for tpu_custom_call.1']
    #allocation10 [shape = 'u8[65536]{0}', space=vmem, size = 0x10000, scoped, tag = 'input window, operand 5, single buffered']
    #allocation11 [shape = 'u8[8192]{0}', space=vmem, size = 0x2000, scoped, tag = 'output window, operand 0']
    %14 = vsyncpa [#allocation3], 0
    %s15 = scalar_lea.sflag [#allocation3], 1
    %16 = vsyncpa %s15, 0
    %17 = vsyncpa [#allocation6], 0
    %s18 = scalar_lea.sflag [#allocation6], 1
    %19 = vsyncpa %s18, 0
    %20 = vsyncpa [#allocation9], 0
    %21 = vsyncpa [#allocation4], 0
    %s22 = scalar_lea.sflag [#allocation4], 1
    %23 = vsyncpa %s22, 0
    loop: start=0, step=1, limit=4
    $region2: #{tpu_custom_call.1} parent=1 // loop_pre_header
      _
    $region3: #{tpu_custom_call.1} parent=1 // loop_header
      %s25 = sphi 0, %s29
      %p26 = scmp.ge.s32.totalorder %s25, 4
      %s32 = sphi 0, %s44
      %s33 = sphi 0, %s40
      %s34 = sphi 0, %s32
      %s35 = sphi 0, %s33
      %s36 = sphi 0, %s34
      %s37 = sphi 0, %s35
      %s49 = sphi 0, %s51
      %s52 = sphi 0, %s49
      %s53 = sphi 0, %s52
      %s69 = sphi 0, %s53
      %s75 = sphi 0, %s77
      %s78 = sphi 0, %s75
      %s79 = sphi 0, %s78
      %s95 = sphi 0, %s79
      %s101 = sphi 0, %s103
      %s104 = sphi 0, %s101
      %s105 = sphi 0, %s104
      %s121 = sphi 0, %s105
      %s125 = sphi 0, %s125
      %s127 = sphi 0, %s125
      %s128 = sphi 0, %s127
      %s142 = sphi 0, %s128
      %s146 = sphi 0, %s146
      %s148 = sphi 0, %s146
      %s149 = sphi 0, %s148
      %s163 = sphi 0, %s149
      %s167 = sphi 0, %s167
      %s169 = sphi 0, %s167
      %s170 = sphi 0, %s169
      %s184 = sphi 0, %s170
      %s188 = sphi 0, %s188
      %s190 = sphi 0, %s188
      %s191 = sphi 0, %s190
      %s205 = sphi 0, %s191
      %s209 = sphi 0, %s209
      %s211 = sphi 0, %s209
      %s212 = sphi 0, %s211
      %s226 = sphi 0, %s212
      %s230 = sphi 0, %s230
      %s232 = sphi 0, %s230
      %s233 = sphi 0, %s232
      %s247 = sphi 0, %s233
      %s255 = sphi 0, %s257
      %s258 = sphi 0, %s255
      %s259 = sphi 0, %s258
      %s275 = sphi 0, %s259
    $region4: #{tpu_custom_call.1} parent=1 // loop_header_branch
      %28 = sbr.rel (%p26) target = $region8
    $region5: #{tpu_custom_call.1} parent=1 // loop_body
      %s30 = ssub.s32 %s25, 1
      %s31 = ssub.s32 %s25, 2
      %s38 = sadd.s32 1, %s33
      %p39 = scmp.ge.s32.totalorder %s38, 1
      %s40 = scalar_select %p39, 0, %s38
      %s41 = sadd.s32 1, %s32
      %s42 = scalar_select %p39, %s41, %s32
      %p43 = scmp.ge.s32.totalorder %s42, 2
      %s44 = scalar_select %p43, 0, %s42
      %s45 = ssub.s32 %s32, %s44
      %s46 = ssub.s32 %s33, %s40
      %s47 = sor.u32 %s45, %s46
      %p48 = scmp.eq.s32.totalorder %s47, 0
      %s50 = sadd.s32 %s49, 1
      %s51 = scalar_select %p48, %s49, %s50
      %p54 = pneg %p48
      %p55 = scmp.eq.s32.totalorder %s25, 1
      %p56 = por %p54, %p55
      %p57 = scmp.ne.s32.totalorder %s49, %s52
      %p58 = scmp.eq.s32.totalorder %s25, 0
      %p59 = por %p57, %p58
      %p60 = scmp.ne.s32.totalorder %s49, %s52
      %p61 = scmp.eq.s32.totalorder %s30, 1
      %p62 = por %p60, %p61
      %p63 = scmp.ne.s32.totalorder %s52, %s53
      %p64 = scmp.eq.s32.totalorder %s30, 0
      %p65 = por %p63, %p64
      %p66 = scmp.ne.s32.totalorder %s52, %s53
      %p67 = scmp.eq.s32.totalorder %s31, 1
      %p68 = por %p66, %p67
      %p70 = scmp.ne.s32.totalorder %s53, %s69
      %p71 = scmp.eq.s32.totalorder %s31, 0
      %p72 = por %p70, %p71
      %s73 = ssub.s32 %s32, %s44
      %p74 = scmp.eq.s32.totalorder %s73, 0
      %s76 = sadd.s32 %s75, 1
      %s77 = scalar_select %p74, %s75, %s76
      %p80 = pneg %p74
      %p81 = scmp.eq.s32.totalorder %s25, 1
      %p82 = por %p80, %p81
      %p83 = scmp.ne.s32.totalorder %s75, %s78
      %p84 = scmp.eq.s32.totalorder %s25, 0
      %p85 = por %p83, %p84
      %p86 = scmp.ne.s32.totalorder %s75, %s78
      %p87 = scmp.eq.s32.totalorder %s30, 1
      %p88 = por %p86, %p87
      %p89 = scmp.ne.s32.totalorder %s78, %s79
      %p90 = scmp.eq.s32.totalorder %s30, 0
      %p91 = por %p89, %p90
      %p92 = scmp.ne.s32.totalorder %s78, %s79
      %p93 = scmp.eq.s32.totalorder %s31, 1
      %p94 = por %p92, %p93
      %p96 = scmp.ne.s32.totalorder %s79, %s95
      %p97 = scmp.eq.s32.totalorder %s31, 0
      %p98 = por %p96, %p97
      %s99 = ssub.s32 %s32, %s44
      %p100 = scmp.eq.s32.totalorder %s99, 0
      %s102 = sadd.s32 %s101, 1
      %s103 = scalar_select %p100, %s101, %s102
      %p106 = pneg %p100
      %p107 = scmp.eq.s32.totalorder %s25, 1
      %p108 = por %p106, %p107
      %p109 = scmp.ne.s32.totalorder %s101, %s104
      %p110 = scmp.eq.s32.totalorder %s25, 0
      %p111 = por %p109, %p110
      %p112 = scmp.ne.s32.totalorder %s101, %s104
      %p113 = scmp.eq.s32.totalorder %s30, 1
      %p114 = por %p112, %p113
      %p115 = scmp.ne.s32.totalorder %s104, %s105
      %p116 = scmp.eq.s32.totalorder %s30, 0
      %p117 = por %p115, %p116
      %p118 = scmp.ne.s32.totalorder %s104, %s105
      %p119 = scmp.eq.s32.totalorder %s31, 1
      %p120 = por %p118, %p119
      %p122 = scmp.ne.s32.totalorder %s105, %s121
      %p123 = scmp.eq.s32.totalorder %s31, 0
      %p124 = por %p122, %p123
      %s126 = sadd.s32 %s125, 1
      %p129 = scmp.eq.s32.totalorder %s25, 1
      %p130 = scmp.ne.s32.totalorder %s125, %s127
      %p131 = scmp.eq.s32.totalorder %s25, 0
      %p132 = por %p130, %p131
      %p133 = scmp.ne.s32.totalorder %s125, %s127
      %p134 = scmp.eq.s32.totalorder %s30, 1
      %p135 = por %p133, %p134
      %p136 = scmp.ne.s32.totalorder %s127, %s128
      %p137 = scmp.eq.s32.totalorder %s30, 0
      %p138 = por %p136, %p137
      %p139 = scmp.ne.s32.totalorder %s127, %s128
      %p140 = scmp.eq.s32.totalorder %s31, 1
      %p141 = por %p139, %p140
      %p143 = scmp.ne.s32.totalorder %s128, %s142
      %p144 = scmp.eq.s32.totalorder %s31, 0
      %p145 = por %p143, %p144
      %s147 = sadd.s32 %s146, 1
      %p150 = scmp.eq.s32.totalorder %s25, 1
      %p151 = scmp.ne.s32.totalorder %s146, %s148
      %p152 = scmp.eq.s32.totalorder %s25, 0
      %p153 = por %p151, %p152
      %p154 = scmp.ne.s32.totalorder %s146, %s148
      %p155 = scmp.eq.s32.totalorder %s30, 1
      %p156 = por %p154, %p155
      %p157 = scmp.ne.s32.totalorder %s148, %s149
      %p158 = scmp.eq.s32.totalorder %s30, 0
      %p159 = por %p157, %p158
      %p160 = scmp.ne.s32.totalorder %s148, %s149
      %p161 = scmp.eq.s32.totalorder %s31, 1
      %p162 = por %p160, %p161
      %p164 = scmp.ne.s32.totalorder %s149, %s163
      %p165 = scmp.eq.s32.totalorder %s31, 0
      %p166 = por %p164, %p165
      %s168 = sadd.s32 %s167, 1
      %p171 = scmp.eq.s32.totalorder %s25, 1
      %p172 = scmp.ne.s32.totalorder %s167, %s169
      %p173 = scmp.eq.s32.totalorder %s25, 0
      %p174 = por %p172, %p173
      %p175 = scmp.ne.s32.totalorder %s167, %s169
      %p176 = scmp.eq.s32.totalorder %s30, 1
      %p177 = por %p175, %p176
      %p178 = scmp.ne.s32.totalorder %s169, %s170
      %p179 = scmp.eq.s32.totalorder %s30, 0
      %p180 = por %p178, %p179
      %p181 = scmp.ne.s32.totalorder %s169, %s170
      %p182 = scmp.eq.s32.totalorder %s31, 1
      %p183 = por %p181, %p182
      %p185 = scmp.ne.s32.totalorder %s170, %s184
      %p186 = scmp.eq.s32.totalorder %s31, 0
      %p187 = por %p185, %p186
      %s189 = sadd.s32 %s188, 1
      %p192 = scmp.eq.s32.totalorder %s25, 1
      %p193 = scmp.ne.s32.totalorder %s188, %s190
      %p194 = scmp.eq.s32.totalorder %s25, 0
      %p195 = por %p193, %p194
      %p196 = scmp.ne.s32.totalorder %s188, %s190
      %p197 = scmp.eq.s32.totalorder %s30, 1
      %p198 = por %p196, %p197
      %p199 = scmp.ne.s32.totalorder %s190, %s191
      %p200 = scmp.eq.s32.totalorder %s30, 0
      %p201 = por %p199, %p200
      %p202 = scmp.ne.s32.totalorder %s190, %s191
      %p203 = scmp.eq.s32.totalorder %s31, 1
      %p204 = por %p202, %p203
      %p206 = scmp.ne.s32.totalorder %s191, %s205
      %p207 = scmp.eq.s32.totalorder %s31, 0
      %p208 = por %p206, %p207
      %s210 = sadd.s32 %s209, 1
      %p213 = scmp.eq.s32.totalorder %s25, 1
      %p214 = scmp.ne.s32.totalorder %s209, %s211
      %p215 = scmp.eq.s32.totalorder %s25, 0
      %p216 = por %p214, %p215
      %p217 = scmp.ne.s32.totalorder %s209, %s211
      %p218 = scmp.eq.s32.totalorder %s30, 1
      %p219 = por %p217, %p218
      %p220 = scmp.ne.s32.totalorder %s211, %s212
      %p221 = scmp.eq.s32.totalorder %s30, 0
      %p222 = por %p220, %p221
      %p223 = scmp.ne.s32.totalorder %s211, %s212
      %p224 = scmp.eq.s32.totalorder %s31, 1
      %p225 = por %p223, %p224
      %p227 = scmp.ne.s32.totalorder %s212, %s226
      %p228 = scmp.eq.s32.totalorder %s31, 0
      %p229 = por %p227, %p228
      %s231 = sadd.s32 %s230, 1
      %p234 = scmp.eq.s32.totalorder %s25, 1
      %p235 = scmp.ne.s32.totalorder %s230, %s232
      %p236 = scmp.eq.s32.totalorder %s25, 0
      %p237 = por %p235, %p236
      %p238 = scmp.ne.s32.totalorder %s230, %s232
      %p239 = scmp.eq.s32.totalorder %s30, 1
      %p240 = por %p238, %p239
      %p241 = scmp.ne.s32.totalorder %s232, %s233
      %p242 = scmp.eq.s32.totalorder %s30, 0
      %p243 = por %p241, %p242
      %p244 = scmp.ne.s32.totalorder %s232, %s233
      %p245 = scmp.eq.s32.totalorder %s31, 1
      %p246 = por %p244, %p245
      %p248 = scmp.ne.s32.totalorder %s233, %s247
      %p249 = scmp.eq.s32.totalorder %s31, 0
      %p250 = por %p248, %p249
      %s251 = ssub.s32 %s32, %s44
      %s252 = ssub.s32 %s33, %s40
      %s253 = sor.u32 %s251, %s252
      %p254 = scmp.eq.s32.totalorder %s253, 0
      %s256 = sadd.s32 %s255, 1
      %s257 = scalar_select %p254, %s255, %s256
      %p260 = pneg %p254
      %p261 = scmp.eq.s32.totalorder %s25, 1
      %p262 = por %p260, %p261
      %p263 = scmp.ne.s32.totalorder %s255, %s258
      %p264 = scmp.eq.s32.totalorder %s25, 0
      %p265 = por %p263, %p264
      %p266 = scmp.ne.s32.totalorder %s255, %s258
      %p267 = scmp.eq.s32.totalorder %s30, 1
      %p268 = por %p266, %p267
      %p269 = scmp.ne.s32.totalorder %s258, %s259
      %p270 = scmp.eq.s32.totalorder %s30, 0
      %p271 = por %p269, %p270
      %p272 = scmp.ne.s32.totalorder %s258, %s259
      %p273 = scmp.eq.s32.totalorder %s31, 1
      %p274 = por %p272, %p273
      %p276 = scmp.ne.s32.totalorder %s259, %s275
      %p277 = scmp.eq.s32.totalorder %s31, 0
      %p278 = por %p276, %p277
      %p279 = scmp.le.s32.totalorder 1, %s25
      %p280 = scmp.lt.s32.totalorder %s25, 3
      %p281 = pnand %p279, %p280
      %p282 = pneg %p281
      // Predicated region
      $region9: #{tpu_custom_call.1} parent=5 // pred_check
        _
      $region10: #{tpu_custom_call.1} parent=5 // pred_check_branch
        %284 = sbr.rel (%p281) target = $region12
      $region11: #{tpu_custom_call.1} parent=5 // pred_region
        %s285 = ssub.s32 %s25, 1
        // Predicated region
        $region13: #{tpu_custom_call.1} parent=11 // pred_check
          %p286 = pneg %p138
        $region14: #{tpu_custom_call.1} parent=11 // pred_check_branch
          %288 = sbr.rel (%p286) target = $region16
        $region15: #{tpu_custom_call.1} parent=11 // pred_region
          %s290 = ssub.s32 2048, 2048
          %291 = vsyncadd [#allocation9], %s290
          %s292 = sshll.u32 [#allocation8], 4
          %s293 = int_to_ptr.vmem [resolvable:$true] %s292
          %298 = dma.hbm_to_vmem [thread:$0]  %s3, 2048, %s293, [#allocation9], 128, 128, 8
        $region16: #{tpu_custom_call.1} parent=11 // pred_fallthru
          _
        // Predicated region
        $region17: #{tpu_custom_call.1} parent=11 // pred_check
          %p299 = pneg %p159
        $region18: #{tpu_custom_call.1} parent=11 // pred_check_branch
          %301 = sbr.rel (%p299) target = $region20
        $region19: #{tpu_custom_call.1} parent=11 // pred_region
          _
        $region20: #{tpu_custom_call.1} parent=11 // pred_fallthru
          _
        // Predicated region
        $region21: #{tpu_custom_call.1} parent=11 // pred_check
          %p302 = pneg %p180
        $region22: #{tpu_custom_call.1} parent=11 // pred_check_branch
          %304 = sbr.rel (%p302) target = $region24
        $region23: #{tpu_custom_call.1} parent=11 // pred_region
          %s306 = ssub.s32 2048, 2048
          %307 = vsyncadd [#allocation9], %s306
          %s308 = sshll.u32 [#allocation10], 4
          %s309 = int_to_ptr.vmem [resolvable:$true] %s308
          %314 = dma.hbm_to_vmem [thread:$0]  %s5, 2048, %s309, [#allocation9], 128, 128, 8
        $region24: #{tpu_custom_call.1} parent=11 // pred_fallthru
          _
        // Predicated region
        $region25: #{tpu_custom_call.1} parent=11 // pred_check
          %p315 = pneg %p201
        $region26: #{tpu_custom_call.1} parent=11 // pred_check_branch
          %317 = sbr.rel (%p315) target = $region28
        $region27: #{tpu_custom_call.1} parent=11 // pred_region
          _
        $region28: #{tpu_custom_call.1} parent=11 // pred_fallthru
          _
        // Predicated region
        $region29: #{tpu_custom_call.1} parent=11 // pred_check
          %p318 = pneg %p222
        $region30: #{tpu_custom_call.1} parent=11 // pred_check_branch
          %320 = sbr.rel (%p318) target = $region32
        $region31: #{tpu_custom_call.1} parent=11 // pred_region
          _
        $region32: #{tpu_custom_call.1} parent=11 // pred_fallthru
          _
        // Predicated region
        $region33: #{tpu_custom_call.1} parent=11 // pred_check
          %p321 = pneg %p243
        $region34: #{tpu_custom_call.1} parent=11 // pred_check_branch
          %323 = sbr.rel (%p321) target = $region36
        $region35: #{tpu_custom_call.1} parent=11 // pred_region
          _
        $region36: #{tpu_custom_call.1} parent=11 // pred_fallthru
          _
      $region12: #{tpu_custom_call.1} parent=5 // pred_fallthru
        _
      %p324 = scmp.lt.s32.totalorder %s25, 2
      // Predicated region
      $region37: #{tpu_custom_call.1} parent=5 // pred_check
        %p325 = pneg %p324
      $region38: #{tpu_custom_call.1} parent=5 // pred_check_branch
        %327 = sbr.rel (%p325) target = $region40
      $region39: #{tpu_custom_call.1} parent=5 // pred_region
        // Predicated region
        $region41: #{tpu_custom_call.1} parent=39 // pred_check
          %p328 = pneg %p59
        $region42: #{tpu_custom_call.1} parent=39 // pred_check_branch
          %330 = sbr.rel (%p328) target = $region44
        $region43: #{tpu_custom_call.1} parent=39 // pred_region
          %s331 = sand.u32 %s49, 1
          %s332 = scalar_lea.sflag [#allocation3], %s331
          %s333 = sand.u32 %s49, 1
          %s334 = smul.addr %s333, 8
          %s335 = scalar_lea.vmem [#allocation2], %s334
          %s337 = ssub.s32 128, 128
          %338 = vsyncadd %s332, %s337
          %s339 = sadd.s32 %s33, %s32
          %s340 = smul.addr %s339, 128
          %s341 = scalar_lea.hbm %s0, %s340
          %s343 = sshll.u32 %s335, 4
          %s344 = int_to_ptr.vmem [resolvable:$true] %s343
          %346 = dma.hbm_to_vmem [thread:$0]  %s341, 128, %s344, %s332
        $region44: #{tpu_custom_call.1} parent=39 // pred_fallthru
          _
        // Predicated region
        $region45: #{tpu_custom_call.1} parent=39 // pred_check
          %p347 = pneg %p85
        $region46: #{tpu_custom_call.1} parent=39 // pred_check_branch
          %349 = sbr.rel (%p347) target = $region48
        $region47: #{tpu_custom_call.1} parent=39 // pred_region
          %s350 = sand.u32 %s25, 1
          %s351 = scalar_lea.sflag [#allocation6], %s350
          %s352 = sand.u32 %s75, 1
          %s353 = smul.addr %s352, 8
          %s354 = scalar_lea.vmem [#allocation5], %s353
          %s356 = ssub.s32 128, 128
          %357 = vsyncadd %s351, %s356
          %s358 = smul.addr %s32, 128
          %s359 = scalar_lea.hbm %s1, %s358
          %s361 = sshll.u32 %s354, 4
          %s362 = int_to_ptr.vmem [resolvable:$true] %s361
          %364 = dma.hbm_to_vmem [thread:$0]  %s359, 128, %s362, %s351
        $region48: #{tpu_custom_call.1} parent=39 // pred_fallthru
          _
        // Predicated region
        $region49: #{tpu_custom_call.1} parent=39 // pred_check
          %p365 = pneg %p111
        $region50: #{tpu_custom_call.1} parent=39 // pred_check_branch
          %367 = sbr.rel (%p365) target = $region52
        $region51: #{tpu_custom_call.1} parent=39 // pred_region
          %s368 = sand.u32 %s25, 1
          %s369 = scalar_lea.sflag [#allocation6], %s368
          %s370 = sand.u32 %s101, 1
          %s371 = smul.addr %s370, 8
          %s372 = scalar_lea.vmem [#allocation7], %s371
          %s374 = ssub.s32 128, 128
          %375 = vsyncadd %s369, %s374
          %s376 = smul.addr %s32, 128
          %s377 = scalar_lea.hbm %s2, %s376
          %s379 = sshll.u32 %s372, 4
          %s380 = int_to_ptr.vmem [resolvable:$true] %s379
          %382 = dma.hbm_to_vmem [thread:$0]  %s377, 128, %s380, %s369
        $region52: #{tpu_custom_call.1} parent=39 // pred_fallthru
          _
      $region40: #{tpu_custom_call.1} parent=5 // pred_fallthru
        _
      %p383 = scmp.le.s32.totalorder 1, %s25
      %p384 = scmp.lt.s32.totalorder %s25, 3
      %p385 = pnand %p383, %p384
      %p386 = pneg %p385
      // Predicated region
      $region53: #{tpu_custom_call.1} parent=5 // pred_check
        _
      $region54: #{tpu_custom_call.1} parent=5 // pred_check_branch
        %388 = sbr.rel (%p385) target = $region56
      $region55: #{tpu_custom_call.1} parent=5 // pred_region
        %s389 = ssub.s32 %s25, 1
        %s390 = sand.u32 %s52, 1
        %s391 = scalar_lea.sflag [#allocation3], %s390
        %s392 = sand.u32 %s52, 1
        %s393 = smul.addr %s392, 8
        %s394 = scalar_lea.vmem [#allocation2], %s393
        // Predicated region
        $region57: #{tpu_custom_call.1} parent=55 // pred_check
          %p395 = pneg %p65
        $region58: #{tpu_custom_call.1} parent=55 // pred_check_branch
          %397 = sbr.rel (%p395) target = $region60
        $region59: #{tpu_custom_call.1} parent=55 // pred_region
          %398 = dma.done %s391, 128
        $region60: #{tpu_custom_call.1} parent=55 // pred_fallthru
          _
        %s399 = sand.u32 %s30, 1
        %s400 = scalar_lea.sflag [#allocation6], %s399
        %s401 = sand.u32 %s78, 1
        %s402 = smul.addr %s401, 8
        %s403 = scalar_lea.vmem [#allocation5], %s402
        // Predicated region
        $region61: #{tpu_custom_call.1} parent=55 // pred_check
          %p404 = pneg %p91
        $region62: #{tpu_custom_call.1} parent=55 // pred_check_branch
          %406 = sbr.rel (%p404) target = $region64
        $region63: #{tpu_custom_call.1} parent=55 // pred_region
          %407 = dma.done %s400, 128
        $region64: #{tpu_custom_call.1} parent=55 // pred_fallthru
          _
        %s408 = sand.u32 %s30, 1
        %s409 = scalar_lea.sflag [#allocation6], %s408
        %s410 = sand.u32 %s104, 1
        %s411 = smul.addr %s410, 8
        %s412 = scalar_lea.vmem [#allocation7], %s411
        // Predicated region
        $region65: #{tpu_custom_call.1} parent=55 // pred_check
          %p413 = pneg %p117
        $region66: #{tpu_custom_call.1} parent=55 // pred_check_branch
          %415 = sbr.rel (%p413) target = $region68
        $region67: #{tpu_custom_call.1} parent=55 // pred_region
          %416 = dma.done %s409, 128
        $region68: #{tpu_custom_call.1} parent=55 // pred_fallthru
          _
        // Predicated region
        $region69: #{tpu_custom_call.1} parent=55 // pred_check
          %p417 = pneg %p138
        $region70: #{tpu_custom_call.1} parent=55 // pred_check_branch
          %419 = sbr.rel (%p417) target = $region72
        $region71: #{tpu_custom_call.1} parent=55 // pred_region
          %420 = dma.done [#allocation9], 2048
        $region72: #{tpu_custom_call.1} parent=55 // pred_fallthru
          _
        // Predicated region
        $region73: #{tpu_custom_call.1} parent=55 // pred_check
          %p421 = pneg %p180
        $region74: #{tpu_custom_call.1} parent=55 // pred_check_branch
          %423 = sbr.rel (%p421) target = $region76
        $region75: #{tpu_custom_call.1} parent=55 // pred_region
          %424 = dma.done [#allocation9], 2048
        $region76: #{tpu_custom_call.1} parent=55 // pred_fallthru
          _
        %s425 = sand.u32 %s52, 1
        %s426 = scalar_lea.sflag [#allocation3], %s425
        %s427 = sand.u32 %s52, 1
        %s428 = smul.addr %s427, 8
        %s429 = scalar_lea.vmem [#allocation2], %s428
        %p430 = pneg %p65
        %p431 = pneg %p62
        %s432 = sand.u32 %s30, 1
        %s433 = scalar_lea.sflag [#allocation6], %s432
        %s434 = sand.u32 %s78, 1
        %s435 = smul.addr %s434, 8
        %s436 = scalar_lea.vmem [#allocation5], %s435
        %p437 = pneg %p91
        %p438 = pneg %p88
        %s439 = sand.u32 %s30, 1
        %s440 = scalar_lea.sflag [#allocation6], %s439
        %s441 = sand.u32 %s104, 1
        %s442 = smul.addr %s441, 8
        %s443 = scalar_lea.vmem [#allocation7], %s442
        %p444 = pneg %p117
        %p445 = pneg %p114
        %p446 = pneg %p138
        %p447 = pneg %p135
        %p448 = pneg %p159
        %p449 = pneg %p156
        %p450 = pneg %p180
        %p451 = pneg %p177
        %p452 = pneg %p201
        %p453 = pneg %p198
        %p454 = pneg %p222
        %p455 = pneg %p219
        %p456 = pneg %p243
        %p457 = pneg %p240
        %p458 = pneg %p271
        %p459 = pneg %p268
        %s460 = sand.u32 %s258, 1
        %s461 = scalar_lea.sflag [#allocation4], %s460
        %s462 = sand.u32 %s258, 1
        %s463 = smul.addr %s462, 8
        %s464 = scalar_lea.vmem [#allocation11], %s463
        %v465 = vld [vmem:[%s394] sm:$0xff]
        %v466 = vld [vmem:[%s403] sm:$0xff]
        %v467 = vld [vmem:[%s412] sm:$0xff]
        %v468 = vmul.f32 %v465, 0.17677669
        %469 = vmatprep.subr.mxu0 0.0
        %470 = vmatpush1.xpose.msra.mxu0 0.0
        %471 = vmatprep.subr.mxu0 0.0
        %472 = vmatpush1.xpose.msra.mxu0 0.0
        %473 = vmatprep.subr.mxu0 0.0
        %474 = vmatpush1.xpose.msra.mxu0 0.0
        %475 = vmatprep.subr.mxu0 0.0
        %476 = vmatpush1.xpose.msra.mxu0 0.0
        %477 = vmatprep.subr.mxu0 0.0
        %478 = vmatpush1.xpose.msra.mxu0 0.0
        %479 = vmatprep.subr.mxu0 0.0
        %480 = vmatpush1.xpose.msra.mxu0 0.0
        %481 = vmatprep.subr.mxu0 0.0
        %482 = vmatpush1.xpose.msra.mxu0 0.0
        %483 = vmatprep.subr.mxu0 0.0
        %484 = vmatpush1.xpose.msra.mxu0 0.0
        %485 = vmatprep.subr.mxu0 0.0
        %486 = vmatpush1.xpose.msra.mxu0 0.0
        %487 = vmatprep.subr.mxu0 0.0
        %488 = vmatpush1.xpose.msra.mxu0 0.0
        %489 = vmatprep.subr.mxu0 0.0
        %490 = vmatpush1.xpose.msra.mxu0 0.0
        %491 = vmatprep.subr.mxu0 0.0
        %492 = vmatpush1.xpose.msra.mxu0 0.0
        %493 = vmatprep.subr.mxu0 0.0
        %494 = vmatpush1.xpose.msra.mxu0 0.0
        %495 = vmatprep.subr.mxu0 0.0
        %496 = vmatpush1.xpose.msra.mxu0 0.0
        %497 = vmatprep.subr.mxu0 0.0
        %498 = vmatpush1.xpose.msra.mxu0 0.0
        %499 = vmatprep.subr.mxu0 0.0
        %500 = vmatpush1.xpose.msra.mxu0 %v466
        %501 = vmatprep.subr.mxu0 0.0
        %502 = vmatpush2.xpose.msra.mxu0 0.0
        %503 = vmatprep.subr.mxu0 0.0
        %504 = vmatpush2.xpose.msra.mxu0 0.0
        %505 = vmatprep.subr.mxu0 0.0
        %506 = vmatpush2.xpose.msra.mxu0 0.0
        %507 = vmatprep.subr.mxu0 0.0
        %508 = vmatpush2.xpose.msra.mxu0 0.0
        %509 = vmatprep.subr.mxu0 0.0
        %510 = vmatpush2.xpose.msra.mxu0 0.0
        %511 = vmatprep.subr.mxu0 0.0
        %512 = vmatpush2.xpose.msra.mxu0 0.0
        %513 = vmatprep.subr.mxu0 0.0
        %514 = vmatpush2.xpose.msra.mxu0 0.0
        %515 = vmatprep.subr.mxu0 0.0
        %516 = vmatpush2.xpose.msra.mxu0 0.0
        %517 = vmatprep.subr.mxu0 0.0
        %518 = vmatpush2.xpose.msra.mxu0 0.0
        %519 = vmatprep.subr.mxu0 0.0
        %520 = vmatpush2.xpose.msra.mxu0 0.0
        %521 = vmatprep.subr.mxu0 0.0
        %522 = vmatpush2.xpose.msra.mxu0 0.0
        %523 = vmatprep.subr.mxu0 0.0
        %524 = vmatpush2.xpose.msra.mxu0 0.0
        %525 = vmatprep.subr.mxu0 0.0
        %526 = vmatpush2.xpose.msra.mxu0 0.0
        %527 = vmatprep.subr.mxu0 0.0
        %528 = vmatpush2.xpose.msra.mxu0 0.0
        %529 = vmatprep.subr.mxu0 0.0
        %530 = vmatpush2.xpose.msra.mxu0 0.0
        %531 = vmatprep.subr.mxu0 0.0
        %532 = vmatpush2.xpose.msra.mxu0 0.0
        %533 = vmatprep.mubr.f32.mxu0 0.0
        %534 = vmatmul.mubr.f32.gmra.mxu0 %v468
        %v535 = vpop.f32.mrf.mxu0
        %v536 = vadd.f32 0.0, %v535
        %v537 = vpop.f32.mrf.mxu0
        %538 = vdwg.mxu0
        %vm539 = vcmask 64512
        %v540 = vsel %vm539, %v536, -inf
        %541 = vmax.xlane.f32.xlu0 %v540
        %v542 = vpop.xlane.xlu0 %541
        %v543 = vsub.f32 %v536, %v542
        %v544 = vmul.f32 %v543, 1.442695
        %v545 = vpow.pop %v544
        %v546 = vsel %vm539, %v545, 0.0
        %547 = vadd.xlane.f32.xlu0 %v546
        %v548 = vpop.xlane.xlu0 %547
        %v549 = vrcp.pop %v548
        %v550 = vmul.f32 %v545, %v549
        %v552 = vsel %vm539, %v550, 0
        %554 = vmatprep.subr.mxu0 0.0
        %555 = vmatpush1.msra.mxu0 0.0
        %556 = vmatprep.subr.mxu0 0.0
        %557 = vmatpush1.msra.mxu0 0.0
        %558 = vmatprep.subr.mxu0 0.0
        %559 = vmatpush1.msra.mxu0 0.0
        %560 = vmatprep.subr.mxu0 0.0
        %561 = vmatpush1.msra.mxu0 0.0
        %562 = vmatprep.subr.mxu0 0.0
        %563 = vmatpush1.msra.mxu0 0.0
        %564 = vmatprep.subr.mxu0 0.0
        %565 = vmatpush1.msra.mxu0 0.0
        %566 = vmatprep.subr.mxu0 0.0
        %567 = vmatpush1.msra.mxu0 0.0
        %568 = vmatprep.subr.mxu0 0.0
        %569 = vmatpush1.msra.mxu0 0.0
        %570 = vmatprep.subr.mxu0 0.0
        %571 = vmatpush1.msra.mxu0 0.0
        %572 = vmatprep.subr.mxu0 0.0
        %573 = vmatpush1.msra.mxu0 0.0
        %574 = vmatprep.subr.mxu0 0.0
        %575 = vmatpush1.msra.mxu0 0.0
        %576 = vmatprep.subr.mxu0 0.0
        %577 = vmatpush1.msra.mxu0 0.0
        %578 = vmatprep.subr.mxu0 0.0
        %579 = vmatpush1.msra.mxu0 0.0
        %580 = vmatprep.subr.mxu0 0.0
        %581 = vmatpush1.msra.mxu0 0.0
        %582 = vmatprep.subr.mxu0 0.0
        %583 = vmatpush1.msra.mxu0 0.0
        %584 = vmatprep.subr.mxu0 0.0
        %585 = vmatpush1.msra.mxu0 %v467
        %586 = vmatprep.subr.mxu0 0.0
        %587 = vmatpush2.msra.mxu0 0.0
        %588 = vmatprep.subr.mxu0 0.0
        %589 = vmatpush2.msra.mxu0 0.0
        %590 = vmatprep.subr.mxu0 0.0
        %591 = vmatpush2.msra.mxu0 0.0
        %592 = vmatprep.subr.mxu0 0.0
        %593 = vmatpush2.msra.mxu0 0.0
        %594 = vmatprep.subr.mxu0 0.0
        %595 = vmatpush2.msra.mxu0 0.0
        %596 = vmatprep.subr.mxu0 0.0
        %597 = vmatpush2.msra.mxu0 0.0
        %598 = vmatprep.subr.mxu0 0.0
        %599 = vmatpush2.msra.mxu0 0.0
        %600 = vmatprep.subr.mxu0 0.0
        %601 = vmatpush2.msra.mxu0 0.0
        %602 = vmatprep.subr.mxu0 0.0
        %603 = vmatpush2.msra.mxu0 0.0
        %604 = vmatprep.subr.mxu0 0.0
        %605 = vmatpush2.msra.mxu0 0.0
        %606 = vmatprep.subr.mxu0 0.0
        %607 = vmatpush2.msra.mxu0 0.0
        %608 = vmatprep.subr.mxu0 0.0
        %609 = vmatpush2.msra.mxu0 0.0
        %610 = vmatprep.subr.mxu0 0.0
        %611 = vmatpush2.msra.mxu0 0.0
        %612 = vmatprep.subr.mxu0 0.0
        %613 = vmatpush2.msra.mxu0 0.0
        %614 = vmatprep.subr.mxu0 0.0
        %615 = vmatpush2.msra.mxu0 0.0
        %616 = vmatprep.subr.mxu0 0.0
        %617 = vmatpush2.msra.mxu0 0.0
        %618 = vmatprep.mubr.f32.mxu0 0.0
        %619 = vmatmul.mubr.f32.gmra.mxu0 %v552
        %v620 = vpop.f32.mrf.mxu0
        %v621 = vadd.f32 0.0, %v620
        %v622 = vpop.f32.mrf.mxu0
        %623 = vdwg.mxu0
        %v624 = vadd.f32 %v465, %v621
        %v625 = vld [vmem:[#allocation8] sm:$0xff]
        %v626 = vld [vmem:[#allocation8 + $0x8] sm:$0xff]
        %v627 = vld [vmem:[#allocation8 + $0x10] sm:$0xff]
        %v628 = vld [vmem:[#allocation8 + $0x18] sm:$0xff]
        %v629 = vld [vmem:[#allocation8 + $0x20] sm:$0xff]
        %v630 = vld [vmem:[#allocation8 + $0x28] sm:$0xff]
        %v631 = vld [vmem:[#allocation8 + $0x30] sm:$0xff]
        %v632 = vld [vmem:[#allocation8 + $0x38] sm:$0xff]
        %v633 = vld [vmem:[#allocation8 + $0x40] sm:$0xff]
        %v634 = vld [vmem:[#allocation8 + $0x48] sm:$0xff]
        %v635 = vld [vmem:[#allocation8 + $0x50] sm:$0xff]
        %v636 = vld [vmem:[#allocation8 + $0x58] sm:$0xff]
        %v637 = vld [vmem:[#allocation8 + $0x60] sm:$0xff]
        %v638 = vld [vmem:[#allocation8 + $0x68] sm:$0xff]
        %v639 = vld [vmem:[#allocation8 + $0x70] sm:$0xff]
        %v640 = vld [vmem:[#allocation8 + $0x78] sm:$0xff]
        %v641 = vld [vmem:[%s4] sm:$0x1]
        %v643 = vlaneseq
        %v644 = vshrl.u32 %v643, 7
        %v645 = vsub.s32 0, %v644
        %v646 = vrot.slane %v641, %v645
        %648 = vmatprep.subr.mxu0 0.0
        %649 = vmatpush1.xpose.msra.mxu0 %v640
        %650 = vmatprep.subr.mxu0 0.0
        %651 = vmatpush1.xpose.msra.mxu0 %v639
        %652 = vmatprep.subr.mxu0 0.0
        %653 = vmatpush1.xpose.msra.mxu0 %v638
        %654 = vmatprep.subr.mxu0 0.0
        %655 = vmatpush1.xpose.msra.mxu0 %v637
        %656 = vmatprep.subr.mxu0 0.0
        %657 = vmatpush1.xpose.msra.mxu0 %v636
        %658 = vmatprep.subr.mxu0 0.0
        %659 = vmatpush1.xpose.msra.mxu0 %v635
        %660 = vmatprep.subr.mxu0 0.0
        %661 = vmatpush1.xpose.msra.mxu0 %v634
        %662 = vmatprep.subr.mxu0 0.0
        %663 = vmatpush1.xpose.msra.mxu0 %v633
        %664 = vmatprep.subr.mxu0 0.0
        %665 = vmatpush1.xpose.msra.mxu0 %v632
        %666 = vmatprep.subr.mxu0 0.0
        %667 = vmatpush1.xpose.msra.mxu0 %v631
        %668 = vmatprep.subr.mxu0 0.0
        %669 = vmatpush1.xpose.msra.mxu0 %v630
        %670 = vmatprep.subr.mxu0 0.0
        %671 = vmatpush1.xpose.msra.mxu0 %v629
        %672 = vmatprep.subr.mxu0 0.0
        %673 = vmatpush1.xpose.msra.mxu0 %v628
        %674 = vmatprep.subr.mxu0 0.0
        %675 = vmatpush1.xpose.msra.mxu0 %v627
        %676 = vmatprep.subr.mxu0 0.0
        %677 = vmatpush1.xpose.msra.mxu0 %v626
        %678 = vmatprep.subr.mxu0 0.0
        %679 = vmatpush1.xpose.msra.mxu0 %v625
        %680 = vmatprep.subr.mxu0 0.0
        %681 = vmatpush2.xpose.msra.mxu0 0.0
        %682 = vmatprep.subr.mxu0 0.0
        %683 = vmatpush2.xpose.msra.mxu0 0.0
        %684 = vmatprep.subr.mxu0 0.0
        %685 = vmatpush2.xpose.msra.mxu0 0.0
        %686 = vmatprep.subr.mxu0 0.0
        %687 = vmatpush2.xpose.msra.mxu0 0.0
        %688 = vmatprep.subr.mxu0 0.0
        %689 = vmatpush2.xpose.msra.mxu0 0.0
        %690 = vmatprep.subr.mxu0 0.0
        %691 = vmatpush2.xpose.msra.mxu0 0.0
        %692 = vmatprep.subr.mxu0 0.0
        %693 = vmatpush2.xpose.msra.mxu0 0.0
        %694 = vmatprep.subr.mxu0 0.0
        %695 = vmatpush2.xpose.msra.mxu0 0.0
        %696 = vmatprep.subr.mxu0 0.0
        %697 = vmatpush2.xpose.msra.mxu0 0.0
        %698 = vmatprep.subr.mxu0 0.0
        %699 = vmatpush2.xpose.msra.mxu0 0.0
        %700 = vmatprep.subr.mxu0 0.0
        %701 = vmatpush2.xpose.msra.mxu0 0.0
        %702 = vmatprep.subr.mxu0 0.0
        %703 = vmatpush2.xpose.msra.mxu0 0.0
        %704 = vmatprep.subr.mxu0 0.0
        %705 = vmatpush2.xpose.msra.mxu0 0.0
        %706 = vmatprep.subr.mxu0 0.0
        %707 = vmatpush2.xpose.msra.mxu0 0.0
        %708 = vmatprep.subr.mxu0 0.0
        %709 = vmatpush2.xpose.msra.mxu0 0.0
        %710 = vmatprep.subr.mxu0 0.0
        %711 = vmatpush2.xpose.msra.mxu0 0.0
        %712 = vmatprep.mubr.f32.mxu0 0.0
        %713 = vmatmul.mubr.f32.gmra.mxu0 %v624
        %v714 = vpop.f32.mrf.mxu0
        %v715 = vadd.f32 %v646, %v714
        %v716 = vpop.f32.mrf.mxu0
        %717 = vdwg.mxu0
        %v718 = vmax.f32 %v715, 0.0
        %v719 = vld [vmem:[#allocation10] sm:$0xff]
        %v720 = vld [vmem:[#allocation10 + $0x8] sm:$0xff]
        %v721 = vld [vmem:[#allocation10 + $0x10] sm:$0xff]
        %v722 = vld [vmem:[#allocation10 + $0x18] sm:$0xff]
        %v723 = vld [vmem:[#allocation10 + $0x20] sm:$0xff]
        %v724 = vld [vmem:[#allocation10 + $0x28] sm:$0xff]
        %v725 = vld [vmem:[#allocation10 + $0x30] sm:$0xff]
        %v726 = vld [vmem:[#allocation10 + $0x38] sm:$0xff]
        %v727 = vld [vmem:[#allocation10 + $0x40] sm:$0xff]
        %v728 = vld [vmem:[#allocation10 + $0x48] sm:$0xff]
        %v729 = vld [vmem:[#allocation10 + $0x50] sm:$0xff]
        %v730 = vld [vmem:[#allocation10 + $0x58] sm:$0xff]
        %v731 = vld [vmem:[#allocation10 + $0x60] sm:$0xff]
        %v732 = vld [vmem:[#allocation10 + $0x68] sm:$0xff]
        %v733 = vld [vmem:[#allocation10 + $0x70] sm:$0xff]
        %v734 = vld [vmem:[#allocation10 + $0x78] sm:$0xff]
        %v735 = vld [vmem:[%s6] sm:$0x1]
        %v737 = vlaneseq
        %v738 = vshrl.u32 %v737, 7
        %v739 = vsub.s32 0, %v738
        %v740 = vrot.slane %v735, %v739
        %742 = vmatprep.subr.mxu0 0.0
        %743 = vmatpush1.xpose.msra.mxu0 %v734
        %744 = vmatprep.subr.mxu0 0.0
        %745 = vmatpush1.xpose.msra.mxu0 %v733
        %746 = vmatprep.subr.mxu0 0.0
        %747 = vmatpush1.xpose.msra.mxu0 %v732
        %748 = vmatprep.subr.mxu0 0.0
        %749 = vmatpush1.xpose.msra.mxu0 %v731
        %750 = vmatprep.subr.mxu0 0.0
        %751 = vmatpush1.xpose.msra.mxu0 %v730
        %752 = vmatprep.subr.mxu0 0.0
        %753 = vmatpush1.xpose.msra.mxu0 %v729
        %754 = vmatprep.subr.mxu0 0.0
        %755 = vmatpush1.xpose.msra.mxu0 %v728
        %756 = vmatprep.subr.mxu0 0.0
        %757 = vmatpush1.xpose.msra.mxu0 %v727
        %758 = vmatprep.subr.mxu0 0.0
        %759 = vmatpush1.xpose.msra.mxu0 %v726
        %760 = vmatprep.subr.mxu0 0.0
        %761 = vmatpush1.xpose.msra.mxu0 %v725
        %762 = vmatprep.subr.mxu0 0.0
        %763 = vmatpush1.xpose.msra.mxu0 %v724
        %764 = vmatprep.subr.mxu0 0.0
        %765 = vmatpush1.xpose.msra.mxu0 %v723
        %766 = vmatprep.subr.mxu0 0.0
        %767 = vmatpush1.xpose.msra.mxu0 %v722
        %768 = vmatprep.subr.mxu0 0.0
        %769 = vmatpush1.xpose.msra.mxu0 %v721
        %770 = vmatprep.subr.mxu0 0.0
        %771 = vmatpush1.xpose.msra.mxu0 %v720
        %772 = vmatprep.subr.mxu0 0.0
        %773 = vmatpush1.xpose.msra.mxu0 %v719
        %774 = vmatprep.subr.mxu0 0.0
        %775 = vmatpush2.xpose.msra.mxu0 0.0
        %776 = vmatprep.subr.mxu0 0.0
        %777 = vmatpush2.xpose.msra.mxu0 0.0
        %778 = vmatprep.subr.mxu0 0.0
        %779 = vmatpush2.xpose.msra.mxu0 0.0
        %780 = vmatprep.subr.mxu0 0.0
        %781 = vmatpush2.xpose.msra.mxu0 0.0
        %782 = vmatprep.subr.mxu0 0.0
        %783 = vmatpush2.xpose.msra.mxu0 0.0
        %784 = vmatprep.subr.mxu0 0.0
        %785 = vmatpush2.xpose.msra.mxu0 0.0
        %786 = vmatprep.subr.mxu0 0.0
        %787 = vmatpush2.xpose.msra.mxu0 0.0
        %788 = vmatprep.subr.mxu0 0.0
        %789 = vmatpush2.xpose.msra.mxu0 0.0
        %790 = vmatprep.subr.mxu0 0.0
        %791 = vmatpush2.xpose.msra.mxu0 0.0
        %792 = vmatprep.subr.mxu0 0.0
        %793 = vmatpush2.xpose.msra.mxu0 0.0
        %794 = vmatprep.subr.mxu0 0.0
        %795 = vmatpush2.xpose.msra.mxu0 0.0
        %796 = vmatprep.subr.mxu0 0.0
        %797 = vmatpush2.xpose.msra.mxu0 0.0
        %798 = vmatprep.subr.mxu0 0.0
        %799 = vmatpush2.xpose.msra.mxu0 0.0
        %800 = vmatprep.subr.mxu0 0.0
        %801 = vmatpush2.xpose.msra.mxu0 0.0
        %802 = vmatprep.subr.mxu0 0.0
        %803 = vmatpush2.xpose.msra.mxu0 0.0
        %804 = vmatprep.subr.mxu0 0.0
        %805 = vmatpush2.xpose.msra.mxu0 0.0
        %806 = vmatprep.mubr.f32.mxu0 0.0
        %807 = vmatmul.mubr.f32.gmra.mxu0 %v718
        %v808 = vpop.f32.mrf.mxu0
        %v809 = vadd.f32 %v740, %v808
        %v810 = vpop.f32.mrf.mxu0
        %811 = vdwg.mxu0
        %v812 = vadd.f32 %v809, %v624
        %813 = vst [vmem:[%s464] sm:$0xff] %v812
        %s814 = sand.u32 %s258, 1
        %s815 = scalar_lea.sflag [#allocation4], %s814
        %s816 = sand.u32 %s258, 1
        %s817 = smul.addr %s816, 8
        %s818 = scalar_lea.vmem [#allocation11], %s817
        // Predicated region
        $region77: #{tpu_custom_call.1} parent=55 // pred_check
          %p819 = pneg %p268
        $region78: #{tpu_custom_call.1} parent=55 // pred_check_branch
          %821 = sbr.rel (%p819) target = $region80
        $region79: #{tpu_custom_call.1} parent=55 // pred_region
          %s823 = ssub.s32 128, 128
          %824 = vsyncadd %s815, %s823
          %s825 = sadd.s32 %s35, %s34
          %s826 = smul.addr %s825, 128
          %s827 = scalar_lea.hbm %s9, %s826
          %s829 = sshll.u32 %s818, 4
          %s830 = int_to_ptr.vmem [resolvable:$true] %s829
          %832 = dma.vmem_to_hbm [thread:$0]  %s830, 128, %s827, %s815
        $region80: #{tpu_custom_call.1} parent=55 // pred_fallthru
          _
      $region56: #{tpu_custom_call.1} parent=5 // pred_fallthru
        _
      %p833 = scmp.le.s32.totalorder 2, %s25
      // Predicated region
      $region81: #{tpu_custom_call.1} parent=5 // pred_check
        %p834 = pneg %p833
      $region82: #{tpu_custom_call.1} parent=5 // pred_check_branch
        %836 = sbr.rel (%p834) target = $region84
      $region83: #{tpu_custom_call.1} parent=5 // pred_region
        %s837 = ssub.s32 %s25, 2
        // Predicated region
        $region85: #{tpu_custom_call.1} parent=83 // pred_check
          %p838 = pneg %p274
        $region86: #{tpu_custom_call.1} parent=83 // pred_check_branch
          %840 = sbr.rel (%p838) target = $region88
        $region87: #{tpu_custom_call.1} parent=83 // pred_region
          %s841 = sand.u32 %s259, 1
          %s842 = scalar_lea.sflag [#allocation4], %s841
          %s843 = sand.u32 %s259, 1
          %s844 = smul.addr %s843, 8
          %s845 = scalar_lea.vmem [#allocation11], %s844
          %846 = dma.done %s842, 128
        $region88: #{tpu_custom_call.1} parent=83 // pred_fallthru
          _
      $region84: #{tpu_custom_call.1} parent=5 // pred_fallthru
        _
    $region6: #{tpu_custom_call.1} parent=1 // loop_footer
      %s29 = sadd.s32 1, %s25
    $region7: #{tpu_custom_call.1} parent=1 // loop_footer_branch
      %24 = sbr.rel target = $region3
    $region8: #{tpu_custom_call.1} parent=1 // loop_exit
      _
    %847 = vsyncpa [#allocation3], 1
    %s848 = scalar_lea.sflag [#allocation3], 1
    %849 = vsyncpa %s848, 1
    %850 = vsyncpa [#allocation6], 1
    %s851 = scalar_lea.sflag [#allocation6], 1
    %852 = vsyncpa %s851, 1
    %853 = vsyncpa [#allocation9], 1
    %854 = vsyncpa [#allocation4], 1
    %s855 = scalar_lea.sflag [#allocation4], 1
    %856 = vsyncpa %s855, 1

</llo_original>
